<compile_context>
chip_gen: v7x
topology: tpu7x:2x2x1
jax: 0.10.0
libtpu: 0.0.40
codegen_flags: <defaults>
</compile_context>

<pallas_src>
import numpy as np
import jax
import jax.numpy as jnp
from jax.experimental import pallas as pl
from jax.experimental.pallas import tpu as pltpu

HIDDEN = (256, 128, 64)
OUT_DIM = 2


def _round_up(x, m):
    return ((x + m - 1) // m) * m


def _leaky_relu(z, negative_slope=0.2):
    # Identical to where(z > 0, z, s*z) for 0 < s < 1; lowers to a single vmax.
    return jnp.maximum(z, negative_slope * z)


def dscrmntor_kernel(x_ref,
                     w1_ref, b1_ref,
                     w2_ref, b2_ref,
                     w3_ref, b3_ref,
                     w4_ref, b4_ref,
                     o_ref):
    # Layer 1: data_dim -> 256, LeakyReLU(0.2).  x already in the matmul dtype.
    h = jnp.dot(x_ref[...], w1_ref[...], preferred_element_type=jnp.float32)
    h = _leaky_relu(h + b1_ref[...])
    # Layer 2: 256 -> 128, LeakyReLU(0.2)
    h = jnp.dot(h.astype(w2_ref.dtype), w2_ref[...],
                preferred_element_type=jnp.float32)
    h = _leaky_relu(h + b2_ref[...])
    # Layer 3: 128 -> 64, LeakyReLU(0.2)
    h = jnp.dot(h.astype(w3_ref.dtype), w3_ref[...],
                preferred_element_type=jnp.float32)
    h = _leaky_relu(h + b3_ref[...])
    # Layer 4: 64 -> 2 logits (true-width output block; no activation)
    out = jnp.dot(h.astype(w4_ref.dtype), w4_ref[...],
                  preferred_element_type=jnp.float32)
    o_ref[...] = (out + b4_ref[...]).astype(o_ref.dtype)


def _vmem_capacity_bytes():
    try:
        return int(pltpu.get_tpu_info().vmem_capacity_bytes)
    except Exception:
        return 64 * 1024 * 1024  # conservative: v7x has 64 MiB per TensorCore


def _build_and_run(x, ws, bs, TB, n_tiles, vmem_limit, cost,
                   single_buffer_weights):
    B_pad, K_pad = x.shape

    def resident(arr):
        # Full-array block, constant block index -> stays resident in VMEM
        # across all batch tiles (DMA'd once, not per grid step).
        if single_buffer_weights:
            return pl.BlockSpec(arr.shape, lambda i: (0, 0),
                                pipeline_mode=pl.Buffered(1))
        return pl.BlockSpec(arr.shape, lambda i: (0, 0))

    in_specs = [pl.BlockSpec((TB, K_pad), lambda i: (i, 0))]
    args = [x]
    for w, b in zip(ws, bs):
        in_specs += [resident(w), resident(b)]
        args += [w, b]

    return pl.pallas_call(
        dscrmntor_kernel,
        out_shape=jax.ShapeDtypeStruct((B_pad, OUT_DIM), jnp.float32),
        grid=(n_tiles,),
        in_specs=in_specs,
        out_specs=pl.BlockSpec((TB, OUT_DIM), lambda i: (i, 0)),
        compiler_params=pltpu.CompilerParams(
            dimension_semantics=("parallel",),
            vmem_limit_bytes=vmem_limit),
        cost_estimate=cost,
    )(*args)


def dscrmntor_forward(x, params, *, batch_tile=1024, weight_dtype=jnp.bfloat16):
    """x: (B, data_dim) f32; params: list of (W, b) with W (in, out), b (1, out)."""
    (w1, b1), (w2, b2), (w3, b3), (w4, b4) = params
    B, data_dim = x.shape
    assert w1.shape[0] == data_dim and w4.shape[1] == OUT_DIM

    # Lane-align layer-1 K: zero-pad data_dim to a multiple of 128 (exact, the
    # matching W1 rows are zero).
    K_pad = _round_up(data_dim, 128)
    if K_pad != data_dim:
        x = jnp.pad(x, ((0, 0), (0, K_pad - data_dim)))
        w1 = jnp.pad(w1, ((0, K_pad - data_dim), (0, 0)))

    # Matmul operands in weight_dtype (bf16 default: native MXU rate, halves the
    # x HBM read and resident weight VMEM); bias-add / LeakyReLU stay f32.
    ws = [w.astype(weight_dtype) for w in (w1, w2, w3, w4)]
    bs = [b.astype(jnp.float32) for b in (b1, b2, b3, b4)]
    x = x.astype(weight_dtype)
    x_elem = int(np.dtype(weight_dtype).itemsize)
    w_bytes = sum(int(w.size) * x_elem + int(b.size) * 4 for w, b in zip(ws, bs))

    # --- Batch-tile selection (generation-aware) ---
    def vmem_need(tb):
        x_tile = tb * K_pad * x_elem
        o_tile = tb * OUT_DIM * 4
        act = tb * sum(HIDDEN) * 4                 # f32 activation live values
        return 2 * (x_tile + o_tile) + 2 * w_bytes + act

    TB = min(int(batch_tile), _round_up(B, 8))      # no 32x padding of tiny batches
    if B >= 512 and pl.cdiv(B, TB) < 2:             # keep >=2 tiles so both v7x TCs work
        TB = _round_up(pl.cdiv(B, 2), 8)
    vmem_cap = _vmem_capacity_bytes()
    budget = min(int(0.6 * vmem_cap), 48 * 1024 * 1024)   # v7x: only 64 MiB / TC
    while TB > 8 and vmem_need(TB) > budget:
        TB = max(8, ((TB // 2) // 8) * 8)

    n_tiles = pl.cdiv(B, TB)
    B_pad = n_tiles * TB
    if B_pad != B:
        x = jnp.pad(x, ((0, B_pad - B), (0, 0)))

    vmem_limit = int(max(16 * 1024 * 1024,
                         min(1.5 * vmem_need(TB) + (2 << 20),
                             min(3 * vmem_cap // 4, 64 * 1024 * 1024))))

    dims = (K_pad,) + HIDDEN + (OUT_DIM,)
    flops = 2 * B_pad * sum(a * b for a, b in zip(dims[:-1], dims[1:]))
    bytes_accessed = B_pad * K_pad * x_elem + w_bytes + B_pad * OUT_DIM * 4
    cost = pl.CostEstimate(flops=int(flops), transcendentals=0,
                           bytes_accessed=int(bytes_accessed))

    try:
        out = _build_and_run(x, ws, bs, TB, n_tiles, vmem_limit, cost,
                             single_buffer_weights=True)
    except Exception:
        # pipeline_mode=pl.Buffered(1) not supported by this jax version:
        # fall back to default double-buffered resident specs (few-100KB VMEM cost).
        out = _build_and_run(x, ws, bs, TB, n_tiles, vmem_limit, cost,
                             single_buffer_weights=False)
    return out[:B] if B_pad != B else out


def init_params(key, data_dim):
    """Deterministic PyTorch-style init: U(-1/sqrt(fan_in), 1/sqrt(fan_in))."""
    dims = (data_dim,) + HIDDEN + (OUT_DIM,)
    params = []
    for i in range(4):
        fan_in, fan_out = dims[i], dims[i + 1]
        key, kw, kb = jax.random.split(key, 3)
        bound = 1.0 / (fan_in ** 0.5)
        # Stored as (in, out) == torch weight (out, in) transposed.
        w = jax.random.uniform(kw, (fan_in, fan_out), jnp.float32, -bound, bound)
        b = jax.random.uniform(kb, (1, fan_out), jnp.float32, -bound, bound)
        params.append((w, b))
    return params


def _reference(x, params, matmul_dtype):
    """Plain-JAX reference with the same mixed-precision contract as the kernel."""
    h = x
    for i, (w, b) in enumerate(params):
        h = jnp.dot(h.astype(matmul_dtype), w.astype(matmul_dtype),
                    preferred_element_type=jnp.float32) + b
        if i < 3:
            h = jnp.where(h > 0, h, 0.2 * h)
    return h


if __name__ == "__main__":
    # Small LINCS-style stand-in: data_dim=120 (exercises the K->128 padding),
    # batch=10 (exercises the batch-tile rounding / padded-row handling).
    batch, data_dim = 10, 120
    key = jax.random.PRNGKey(0)
    key, kx = jax.random.split(key)
    x = jax.random.normal(kx, (batch, data_dim), jnp.float32)
    params = init_params(key, data_dim)

    # Default mixed-precision path (bf16 matmul operands, f32 accum/bias/act).
    out_bf16 = jax.block_until_ready(dscrmntor_forward(x, params))
    ref_bf16 = _reference(x, params, jnp.bfloat16)
    assert out_bf16.shape == (batch, OUT_DIM)
    assert jnp.allclose(out_bf16, ref_bf16, atol=2e-3, rtol=2e-3), \
        float(jnp.max(jnp.abs(out_bf16 - ref_bf16)))

    # Full f32 path: tight-tolerance check against the plain-JAX reference.
    out_f32 = jax.block_until_ready(
        dscrmntor_forward(x, params, weight_dtype=jnp.float32))
    ref_f32 = _reference(x, params, jnp.float32)
    assert out_f32.shape == (batch, OUT_DIM)
    assert jnp.allclose(out_f32, ref_f32, atol=1e-4, rtol=1e-4), \
        float(jnp.max(jnp.abs(out_f32 - ref_f32)))

    print("KERNEL_OK")
</pallas_src>

<mosaic_0001>
module attributes {stable_mosaic.version = 11 : i64} {
  func.func @dscrmntor_kernel(%arg0: i32, %arg1: memref<16x128xbf16, #tpu.memory_space<vmem>>, %arg2: memref<128x256xbf16, #tpu.memory_space<vmem>>, %arg3: memref<1x256xf32, #tpu.memory_space<vmem>>, %arg4: memref<256x128xbf16, #tpu.memory_space<vmem>>, %arg5: memref<1x128xf32, #tpu.memory_space<vmem>>, %arg6: memref<128x64xbf16, #tpu.memory_space<vmem>>, %arg7: memref<1x64xf32, #tpu.memory_space<vmem>>, %arg8: memref<64x2xbf16, #tpu.memory_space<vmem>>, %arg9: memref<1x2xf32, #tpu.memory_space<vmem>>, %arg10: memref<16x2xf32, #tpu.memory_space<vmem>>) attributes {dimension_semantics = [#tpu.dimension_semantics<parallel>], iteration_bounds = array<i64: 1>, scalar_prefetch = 0 : i64, scratch_operands = 0 : i64, tpu.core_type = #tpu.core_type<tc>, window_params = [{transform_indices = @transform_0, window_bounds = array<i64: 16, 128>}, {pipeline_mode = #tpu.pipeline_mode<synchronous>, transform_indices = @transform_1, window_bounds = array<i64: 128, 256>}, {pipeline_mode = #tpu.pipeline_mode<synchronous>, transform_indices = @transform_2, window_bounds = array<i64: 1, 256>}, {pipeline_mode = #tpu.pipeline_mode<synchronous>, transform_indices = @transform_3, window_bounds = array<i64: 256, 128>}, {pipeline_mode = #tpu.pipeline_mode<synchronous>, transform_indices = @transform_4, window_bounds = array<i64: 1, 128>}, {pipeline_mode = #tpu.pipeline_mode<synchronous>, transform_indices = @transform_5, window_bounds = array<i64: 128, 64>}, {pipeline_mode = #tpu.pipeline_mode<synchronous>, transform_indices = @transform_6, window_bounds = array<i64: 1, 64>}, {pipeline_mode = #tpu.pipeline_mode<synchronous>, transform_indices = @transform_7, window_bounds = array<i64: 64, 2>}, {pipeline_mode = #tpu.pipeline_mode<synchronous>, transform_indices = @transform_8, window_bounds = array<i64: 1, 2>}, {transform_indices = @transform_9, window_bounds = array<i64: 16, 2>}]} {
    %c0 = arith.constant 0 : index
    %c0_0 = arith.constant 0 : index
    %0 = vector.load %arg1[%c0, %c0_0] : memref<16x128xbf16, #tpu.memory_space<vmem>>, vector<16x128xbf16>
    %c0_1 = arith.constant 0 : index
    %c0_2 = arith.constant 0 : index
    %1 = vector.load %arg2[%c0_1, %c0_2] : memref<128x256xbf16, #tpu.memory_space<vmem>>, vector<128x256xbf16>
    %cst = arith.constant dense<0.000000e+00> : vector<16x256xf32>
    %2 = tpu.matmul %0, %1, %cst {dimension_numbers = #tpu.dot_dimension_numbers<[1], [0], [0], [1], [0, 0, 1, 1], [], []>} : vector<16x128xbf16>, vector<128x256xbf16>, vector<16x256xf32> -> vector<16x256xf32>
    %c0_3 = arith.constant 0 : index
    %c0_4 = arith.constant 0 : index
    %3 = vector.load %arg3[%c0_3, %c0_4] : memref<1x256xf32, #tpu.memory_space<vmem>>, vector<1x256xf32>
    %4 = vector.broadcast %3 : vector<1x256xf32> to vector<16x256xf32>
    %5 = arith.addf %2, %4 : vector<16x256xf32>
    %cst_5 = arith.constant 2.000000e-01 : f32
    %6 = vector.broadcast %cst_5 : f32 to vector<16x256xf32>
    %7 = arith.mulf %6, %5 : vector<16x256xf32>
    %8 = arith.maximumf %5, %7 : vector<16x256xf32>
    %9 = arith.truncf %8 : vector<16x256xf32> to vector<16x256xbf16>
    %c0_6 = arith.constant 0 : index
    %c0_7 = arith.constant 0 : index
    %10 = vector.load %arg4[%c0_6, %c0_7] : memref<256x128xbf16, #tpu.memory_space<vmem>>, vector<256x128xbf16>
    %cst_8 = arith.constant dense<0.000000e+00> : vector<16x128xf32>
    %11 = tpu.matmul %9, %10, %cst_8 {dimension_numbers = #tpu.dot_dimension_numbers<[1], [0], [0], [1], [0, 0, 1, 1], [], []>} : vector<16x256xbf16>, vector<256x128xbf16>, vector<16x128xf32> -> vector<16x128xf32>
    %c0_9 = arith.constant 0 : index
    %c0_10 = arith.constant 0 : index
    %12 = vector.load %arg5[%c0_9, %c0_10] : memref<1x128xf32, #tpu.memory_space<vmem>>, vector<1x128xf32>
    %13 = vector.broadcast %12 : vector<1x128xf32> to vector<16x128xf32>
    %14 = arith.addf %11, %13 : vector<16x128xf32>
    %cst_11 = arith.constant 2.000000e-01 : f32
    %15 = vector.broadcast %cst_11 : f32 to vector<16x128xf32>
    %16 = arith.mulf %15, %14 : vector<16x128xf32>
    %17 = arith.maximumf %14, %16 : vector<16x128xf32>
    %18 = arith.truncf %17 : vector<16x128xf32> to vector<16x128xbf16>
    %c0_12 = arith.constant 0 : index
    %c0_13 = arith.constant 0 : index
    %19 = vector.load %arg6[%c0_12, %c0_13] : memref<128x64xbf16, #tpu.memory_space<vmem>>, vector<128x64xbf16>
    %cst_14 = arith.constant dense<0.000000e+00> : vector<16x64xf32>
    %20 = tpu.matmul %18, %19, %cst_14 {dimension_numbers = #tpu.dot_dimension_numbers<[1], [0], [0], [1], [0, 0, 1, 1], [], []>} : vector<16x128xbf16>, vector<128x64xbf16>, vector<16x64xf32> -> vector<16x64xf32>
    %c0_15 = arith.constant 0 : index
    %c0_16 = arith.constant 0 : index
    %21 = vector.load %arg7[%c0_15, %c0_16] : memref<1x64xf32, #tpu.memory_space<vmem>>, vector<1x64xf32>
    %22 = vector.broadcast %21 : vector<1x64xf32> to vector<16x64xf32>
    %23 = arith.addf %20, %22 : vector<16x64xf32>
    %cst_17 = arith.constant 2.000000e-01 : f32
    %24 = vector.broadcast %cst_17 : f32 to vector<16x64xf32>
    %25 = arith.mulf %24, %23 : vector<16x64xf32>
    %26 = arith.maximumf %23, %25 : vector<16x64xf32>
    %27 = arith.truncf %26 : vector<16x64xf32> to vector<16x64xbf16>
    %c0_18 = arith.constant 0 : index
    %c0_19 = arith.constant 0 : index
    %28 = vector.load %arg8[%c0_18, %c0_19] : memref<64x2xbf16, #tpu.memory_space<vmem>>, vector<64x2xbf16>
    %cst_20 = arith.constant dense<0.000000e+00> : vector<16x2xf32>
    %29 = tpu.matmul %27, %28, %cst_20 {dimension_numbers = #tpu.dot_dimension_numbers<[1], [0], [0], [1], [0, 0, 1, 1], [], []>} : vector<16x64xbf16>, vector<64x2xbf16>, vector<16x2xf32> -> vector<16x2xf32>
    %c0_21 = arith.constant 0 : index
    %c0_22 = arith.constant 0 : index
    %30 = vector.load %arg9[%c0_21, %c0_22] : memref<1x2xf32, #tpu.memory_space<vmem>>, vector<1x2xf32>
    %31 = vector.broadcast %30 : vector<1x2xf32> to vector<16x2xf32>
    %32 = arith.addf %29, %31 : vector<16x2xf32>
    %c0_23 = arith.constant 0 : index
    %c0_24 = arith.constant 0 : index
    %33 = vector.load %arg10[%c0_23, %c0_24] : memref<16x2xf32, #tpu.memory_space<vmem>>, vector<16x2xf32>
    tpu.vector_store %arg10[%c0_23, %c0_24], %32 {strides = array<i32>} : memref<16x2xf32, #tpu.memory_space<vmem>>, vector<16x2xf32>,
    return
  }
  func.func @transform_0(%arg0: i32) -> (i32, i32) {
    %c0_i32 = arith.constant 0 : i32
    %c0_i32_0 = arith.constant 0 : i32
    return %arg0, %c0_i32 : i32, i32
  }
  func.func @transform_1(%arg0: i32) -> (i32, i32) {
    %c0_i32 = arith.constant 0 : i32
    %c0_i32_0 = arith.constant 0 : i32
    %c0_i32_1 = arith.constant 0 : i32
    return %c0_i32, %c0_i32_0 : i32, i32
  }
  func.func @transform_2(%arg0: i32) -> (i32, i32) {
    %c0_i32 = arith.constant 0 : i32
    %c0_i32_0 = arith.constant 0 : i32
    %c0_i32_1 = arith.constant 0 : i32
    return %c0_i32, %c0_i32_0 : i32, i32
  }
  func.func @transform_3(%arg0: i32) -> (i32, i32) {
    %c0_i32 = arith.constant 0 : i32
    %c0_i32_0 = arith.constant 0 : i32
    %c0_i32_1 = arith.constant 0 : i32
    return %c0_i32, %c0_i32_0 : i32, i32
  }
  func.func @transform_4(%arg0: i32) -> (i32, i32) {
    %c0_i32 = arith.constant 0 : i32
    %c0_i32_0 = arith.constant 0 : i32
    %c0_i32_1 = arith.constant 0 : i32
    return %c0_i32, %c0_i32_0 : i32, i32
  }
  func.func @transform_5(%arg0: i32) -> (i32, i32) {
    %c0_i32 = arith.constant 0 : i32
    %c0_i32_0 = arith.constant 0 : i32
    %c0_i32_1 = arith.constant 0 : i32
    return %c0_i32, %c0_i32_0 : i32, i32
  }
  func.func @transform_6(%arg0: i32) -> (i32, i32) {
    %c0_i32 = arith.constant 0 : i32
    %c0_i32_0 = arith.constant 0 : i32
    %c0_i32_1 = arith.constant 0 : i32
    return %c0_i32, %c0_i32_0 : i32, i32
  }
  func.func @transform_7(%arg0: i32) -> (i32, i32) {
    %c0_i32 = arith.constant 0 : i32
    %c0_i32_0 = arith.constant 0 : i32
    %c0_i32_1 = arith.constant 0 : i32
    return %c0_i32, %c0_i32_0 : i32, i32
  }
  func.func @transform_8(%arg0: i32) -> (i32, i32) {
    %c0_i32 = arith.constant 0 : i32
    %c0_i32_0 = arith.constant 0 : i32
    %c0_i32_1 = arith.constant 0 : i32
    return %c0_i32, %c0_i32_0 : i32, i32
  }
  func.func @transform_9(%arg0: i32) -> (i32, i32) {
    %c0_i32 = arith.constant 0 : i32
    %c0_i32_0 = arith.constant 0 : i32
    return %arg0, %c0_i32 : i32, i32
  }
}

module attributes {stable_mosaic.version = 11 : i64} {
  func.func @dscrmntor_kernel(%arg0: i32, %arg1: memref<16x128xbf16, #tpu.memory_space<vmem>>, %arg2: memref<128x256xbf16, #tpu.memory_space<vmem>>, %arg3: memref<1x256xf32, #tpu.memory_space<vmem>>, %arg4: memref<256x128xbf16, #tpu.memory_space<vmem>>, %arg5: memref<1x128xf32, #tpu.memory_space<vmem>>, %arg6: memref<128x64xbf16, #tpu.memory_space<vmem>>, %arg7: memref<1x64xf32, #tpu.memory_space<vmem>>, %arg8: memref<64x2xbf16, #tpu.memory_space<vmem>>, %arg9: memref<1x2xf32, #tpu.memory_space<vmem>>, %arg10: memref<16x2xf32, #tpu.memory_space<vmem>>) attributes {dimension_semantics = [#tpu.dimension_semantics<parallel>], iteration_bounds = array<i64: 1>, scalar_prefetch = 0 : i64, scratch_operands = 0 : i64, tpu.core_type = #tpu.core_type<tc>, window_params = [{transform_indices = @transform_0, window_bounds = array<i64: 16, 128>}, {pipeline_mode = #tpu.pipeline_mode<synchronous>, transform_indices = @transform_1, window_bounds = array<i64: 128, 256>}, {pipeline_mode = #tpu.pipeline_mode<synchronous>, transform_indices = @transform_2, window_bounds = array<i64: 1, 256>}, {pipeline_mode = #tpu.pipeline_mode<synchronous>, transform_indices = @transform_3, window_bounds = array<i64: 256, 128>}, {pipeline_mode = #tpu.pipeline_mode<synchronous>, transform_indices = @transform_4, window_bounds = array<i64: 1, 128>}, {pipeline_mode = #tpu.pipeline_mode<synchronous>, transform_indices = @transform_5, window_bounds = array<i64: 128, 64>}, {pipeline_mode = #tpu.pipeline_mode<synchronous>, transform_indices = @transform_6, window_bounds = array<i64: 1, 64>}, {pipeline_mode = #tpu.pipeline_mode<synchronous>, transform_indices = @transform_7, window_bounds = array<i64: 64, 2>}, {pipeline_mode = #tpu.pipeline_mode<synchronous>, transform_indices = @transform_8, window_bounds = array<i64: 1, 2>}, {transform_indices = @transform_9, window_bounds = array<i64: 16, 2>}]} {
    %c0 = arith.constant 0 : index
    %c0_0 = arith.constant 0 : index
    %0 = vector.load %arg1[%c0, %c0_0] : memref<16x128xbf16, #tpu.memory_space<vmem>>, vector<16x128xbf16>
    %c0_1 = arith.constant 0 : index
    %c0_2 = arith.constant 0 : index
    %1 = vector.load %arg2[%c0_1, %c0_2] : memref<128x256xbf16, #tpu.memory_space<vmem>>, vector<128x256xbf16>
    %cst = arith.constant dense<0.000000e+00> : vector<16x256xf32>
    %2 = tpu.matmul %0, %1, %cst {dimension_numbers = #tpu.dot_dimension_numbers<[1], [0], [0], [1], [0, 0, 1, 1], [], []>} : vector<16x128xbf16>, vector<128x256xbf16>, vector<16x256xf32> -> vector<16x256xf32>
    %c0_3 = arith.constant 0 : index
    %c0_4 = arith.constant 0 : index
    %3 = vector.load %arg3[%c0_3, %c0_4] : memref<1x256xf32, #tpu.memory_space<vmem>>, vector<1x256xf32>
    %4 = vector.broadcast %3 : vector<1x256xf32> to vector<16x256xf32>
    %5 = arith.addf %2, %4 : vector<16x256xf32>
    %cst_5 = arith.constant 2.000000e-01 : f32
    %6 = vector.broadcast %cst_5 : f32 to vector<16x256xf32>
    %7 = arith.mulf %6, %5 : vector<16x256xf32>
    %8 = arith.maximumf %5, %7 : vector<16x256xf32>
    %9 = arith.truncf %8 : vector<16x256xf32> to vector<16x256xbf16>
    %c0_6 = arith.constant 0 : index
    %c0_7 = arith.constant 0 : index
    %10 = vector.load %arg4[%c0_6, %c0_7] : memref<256x128xbf16, #tpu.memory_space<vmem>>, vector<256x128xbf16>
    %cst_8 = arith.constant dense<0.000000e+00> : vector<16x128xf32>
    %11 = tpu.matmul %9, %10, %cst_8 {dimension_numbers = #tpu.dot_dimension_numbers<[1], [0], [0], [1], [0, 0, 1, 1], [], []>} : vector<16x256xbf16>, vector<256x128xbf16>, vector<16x128xf32> -> vector<16x128xf32>
    %c0_9 = arith.constant 0 : index
    %c0_10 = arith.constant 0 : index
    %12 = vector.load %arg5[%c0_9, %c0_10] : memref<1x128xf32, #tpu.memory_space<vmem>>, vector<1x128xf32>
    %13 = vector.broadcast %12 : vector<1x128xf32> to vector<16x128xf32>
    %14 = arith.addf %11, %13 : vector<16x128xf32>
    %cst_11 = arith.constant 2.000000e-01 : f32
    %15 = vector.broadcast %cst_11 : f32 to vector<16x128xf32>
    %16 = arith.mulf %15, %14 : vector<16x128xf32>
    %17 = arith.maximumf %14, %16 : vector<16x128xf32>
    %18 = arith.truncf %17 : vector<16x128xf32> to vector<16x128xbf16>
    %c0_12 = arith.constant 0 : index
    %c0_13 = arith.constant 0 : index
    %19 = vector.load %arg6[%c0_12, %c0_13] : memref<128x64xbf16, #tpu.memory_space<vmem>>, vector<128x64xbf16>
    %cst_14 = arith.constant dense<0.000000e+00> : vector<16x64xf32>
    %20 = tpu.matmul %18, %19, %cst_14 {dimension_numbers = #tpu.dot_dimension_numbers<[1], [0], [0], [1], [0, 0, 1, 1], [], []>} : vector<16x128xbf16>, vector<128x64xbf16>, vector<16x64xf32> -> vector<16x64xf32>
    %c0_15 = arith.constant 0 : index
    %c0_16 = arith.constant 0 : index
    %21 = vector.load %arg7[%c0_15, %c0_16] : memref<1x64xf32, #tpu.memory_space<vmem>>, vector<1x64xf32>
    %22 = vector.broadcast %21 : vector<1x64xf32> to vector<16x64xf32>
    %23 = arith.addf %20, %22 : vector<16x64xf32>
    %cst_17 = arith.constant 2.000000e-01 : f32
    %24 = vector.broadcast %cst_17 : f32 to vector<16x64xf32>
    %25 = arith.mulf %24, %23 : vector<16x64xf32>
    %26 = arith.maximumf %23, %25 : vector<16x64xf32>
    %27 = arith.truncf %26 : vector<16x64xf32> to vector<16x64xbf16>
    %c0_18 = arith.constant 0 : index
    %c0_19 = arith.constant 0 : index
    %28 = vector.load %arg8[%c0_18, %c0_19] : memref<64x2xbf16, #tpu.memory_space<vmem>>, vector<64x2xbf16>
    %cst_20 = arith.constant dense<0.000000e+00> : vector<16x2xf32>
    %29 = tpu.matmul %27, %28, %cst_20 {dimension_numbers = #tpu.dot_dimension_numbers<[1], [0], [0], [1], [0, 0, 1, 1], [], []>} : vector<16x64xbf16>, vector<64x2xbf16>, vector<16x2xf32> -> vector<16x2xf32>
    %c0_21 = arith.constant 0 : index
    %c0_22 = arith.constant 0 : index
    %30 = vector.load %arg9[%c0_21, %c0_22] : memref<1x2xf32, #tpu.memory_space<vmem>>, vector<1x2xf32>
    %31 = vector.broadcast %30 : vector<1x2xf32> to vector<16x2xf32>
    %32 = arith.addf %29, %31 : vector<16x2xf32>
    %c0_23 = arith.constant 0 : index
    %c0_24 = arith.constant 0 : index
    %33 = vector.load %arg10[%c0_23, %c0_24] : memref<16x2xf32, #tpu.memory_space<vmem>>, vector<16x2xf32>
    tpu.vector_store %arg10[%c0_23, %c0_24], %32 {strides = array<i32>} : memref<16x2xf32, #tpu.memory_space<vmem>>, vector<16x2xf32>,
    return
  }
  func.func @transform_0(%arg0: i32) -> (i32, i32) {
    %c0_i32 = arith.constant 0 : i32
    %c0_i32_0 = arith.constant 0 : i32
    return %arg0, %c0_i32 : i32, i32
  }
  func.func @transform_1(%arg0: i32) -> (i32, i32) {
    %c0_i32 = arith.constant 0 : i32
    %c0_i32_0 = arith.constant 0 : i32
    %c0_i32_1 = arith.constant 0 : i32
    return %c0_i32, %c0_i32_0 : i32, i32
  }
  func.func @transform_2(%arg0: i32) -> (i32, i32) {
    %c0_i32 = arith.constant 0 : i32
    %c0_i32_0 = arith.constant 0 : i32
    %c0_i32_1 = arith.constant 0 : i32
    return %c0_i32, %c0_i32_0 : i32, i32
  }
  func.func @transform_3(%arg0: i32) -> (i32, i32) {
    %c0_i32 = arith.constant 0 : i32
    %c0_i32_0 = arith.constant 0 : i32
    %c0_i32_1 = arith.constant 0 : i32
    return %c0_i32, %c0_i32_0 : i32, i32
  }
  func.func @transform_4(%arg0: i32) -> (i32, i32) {
    %c0_i32 = arith.constant 0 : i32
    %c0_i32_0 = arith.constant 0 : i32
    %c0_i32_1 = arith.constant 0 : i32
    return %c0_i32, %c0_i32_0 : i32, i32
  }
  func.func @transform_5(%arg0: i32) -> (i32, i32) {
    %c0_i32 = arith.constant 0 : i32
    %c0_i32_0 = arith.constant 0 : i32
    %c0_i32_1 = arith.constant 0 : i32
    return %c0_i32, %c0_i32_0 : i32, i32
  }
  func.func @transform_6(%arg0: i32) -> (i32, i32) {
    %c0_i32 = arith.constant 0 : i32
    %c0_i32_0 = arith.constant 0 : i32
    %c0_i32_1 = arith.constant 0 : i32
    return %c0_i32, %c0_i32_0 : i32, i32
  }
  func.func @transform_7(%arg0: i32) -> (i32, i32) {
    %c0_i32 = arith.constant 0 : i32
    %c0_i32_0 = arith.constant 0 : i32
    %c0_i32_1 = arith.constant 0 : i32
    return %c0_i32, %c0_i32_0 : i32, i32
  }
  func.func @transform_8(%arg0: i32) -> (i32, i32) {
    %c0_i32 = arith.constant 0 : i32
    %c0_i32_0 = arith.constant 0 : i32
    %c0_i32_1 = arith.constant 0 : i32
    return %c0_i32, %c0_i32_0 : i32, i32
  }
  func.func @transform_9(%arg0: i32) -> (i32, i32) {
    %c0_i32 = arith.constant 0 : i32
    %c0_i32_0 = arith.constant 0 : i32
    return %arg0, %c0_i32 : i32, i32
  }
}

</mosaic_0001>

<llo_original>
// kernel: tpu_custom_call.1
$region0: #{tpu_custom_call.1}
  #allocation0 [shape = 'u32[]', space=smem, size = 0x4, offset = 0x4, fixed_abs, tag = 'smem constant byte address 0x4 - core index']
  #allocation1 [shape = 'u32[144,128]{1,0:T(1,128)}', space=vmem, size = 0x12000, scoped, tag = 'internal scratch']
  %s0 = inlined_call_operand.hbm [shape: bf16[16,128], index: 0, kind: input, shape index: {}]
  %s1 = inlined_call_operand.vmem [shape: bf16[128,256], index: 1, kind: input, shape index: {}]
  %s2 = inlined_call_operand.vmem [shape: f32[1,256], index: 2, kind: input, shape index: {}]
  %s3 = inlined_call_operand.hbm [shape: bf16[256,128], index: 3, kind: input, shape index: {}]
  %s4 = inlined_call_operand.vmem [shape: f32[1,128], index: 4, kind: input, shape index: {}]
  %s5 = inlined_call_operand.vmem [shape: bf16[128,64], index: 5, kind: input, shape index: {}]
  %s6 = inlined_call_operand.vmem [shape: f32[1,64], index: 6, kind: input, shape index: {}]
  %s7 = inlined_call_operand.vmem [shape: bf16[64,2], index: 7, kind: input, shape index: {}]
  %s8 = inlined_call_operand.vmem [shape: f32[1,2], index: 8, kind: input, shape index: {}]
  %s9 = inlined_call_operand.vmem [shape: f32[16,2], index: 9, kind: output, shape index: {}]
  %s10 = sld [smem:[#allocation0]]
  $region54: #{tpu_custom_call.1} parent=0
    _
  %s12 = ssub.s32 1, %s10
  %s13 = scalar_select 0, %s12, %s10
  $region1: #{tpu_custom_call.1} parent=0
    #allocation2 [shape = 'u8[4096]{0}', space=vmem, size = 0x1000, scoped, tag = 'input window, operand 0, single buffered']
    #allocation3 [shape = 's32[1]{0}', space=sflag, size = 0x4, scoped, tag = 'scoped memory for tpu_custom_call.1']
    #allocation4 [shape = 'u8[65536]{0}', space=vmem, size = 0x10000, scoped, tag = 'input window, operand 3, single buffered']
    #allocation5 [shape = 's32[1]{0}', space=sflag, size = 0x4, scoped, tag = 'scoped memory for tpu_custom_call.1']
    %14 = vsyncpa [#allocation3], 0
    %15 = vsyncpa [#allocation5], 0
    // Predicated region
    $region2: #{tpu_custom_call.1} parent=1 // pred_check
      _
    $region3: #{tpu_custom_call.1} parent=1 // pred_check_branch
      %17 = sbr.rel (0) target = $region5
    $region4: #{tpu_custom_call.1} parent=1 // pred_region
      %s19 = ssub.s32 128, 128
      %20 = vsyncadd [#allocation3], %s19
      %s21 = sshll.u32 [#allocation2], 4
      %s22 = int_to_ptr.vmem [resolvable:$true] %s21
      %27 = dma.hbm_to_vmem [thread:$0]  %s0, 128, %s22, [#allocation3], 64, 64, 4
    $region5: #{tpu_custom_call.1} parent=1 // pred_fallthru
      _
    // Predicated region
    $region6: #{tpu_custom_call.1} parent=1 // pred_check
      _
    $region7: #{tpu_custom_call.1} parent=1 // pred_check_branch
      %29 = sbr.rel (0) target = $region9
    $region8: #{tpu_custom_call.1} parent=1 // pred_region
      _
    $region9: #{tpu_custom_call.1} parent=1 // pred_fallthru
      _
    // Predicated region
    $region10: #{tpu_custom_call.1} parent=1 // pred_check
      _
    $region11: #{tpu_custom_call.1} parent=1 // pred_check_branch
      %31 = sbr.rel (0) target = $region13
    $region12: #{tpu_custom_call.1} parent=1 // pred_region
      _
    $region13: #{tpu_custom_call.1} parent=1 // pred_fallthru
      _
    // Predicated region
    $region14: #{tpu_custom_call.1} parent=1 // pred_check
      _
    $region15: #{tpu_custom_call.1} parent=1 // pred_check_branch
      %33 = sbr.rel (0) target = $region17
    $region16: #{tpu_custom_call.1} parent=1 // pred_region
      %s35 = ssub.s32 2048, 2048
      %36 = vsyncadd [#allocation5], %s35
      %s37 = sshll.u32 [#allocation4], 4
      %s38 = int_to_ptr.vmem [resolvable:$true] %s37
      %43 = dma.hbm_to_vmem [thread:$0]  %s3, 2048, %s38, [#allocation5], 64, 64, 4
    $region17: #{tpu_custom_call.1} parent=1 // pred_fallthru
      _
    // Predicated region
    $region18: #{tpu_custom_call.1} parent=1 // pred_check
      _
    $region19: #{tpu_custom_call.1} parent=1 // pred_check_branch
      %45 = sbr.rel (0) target = $region21
    $region20: #{tpu_custom_call.1} parent=1 // pred_region
      _
    $region21: #{tpu_custom_call.1} parent=1 // pred_fallthru
      _
    // Predicated region
    $region22: #{tpu_custom_call.1} parent=1 // pred_check
      _
    $region23: #{tpu_custom_call.1} parent=1 // pred_check_branch
      %47 = sbr.rel (0) target = $region25
    $region24: #{tpu_custom_call.1} parent=1 // pred_region
      _
    $region25: #{tpu_custom_call.1} parent=1 // pred_fallthru
      _
    // Predicated region
    $region26: #{tpu_custom_call.1} parent=1 // pred_check
      _
    $region27: #{tpu_custom_call.1} parent=1 // pred_check_branch
      %49 = sbr.rel (0) target = $region29
    $region28: #{tpu_custom_call.1} parent=1 // pred_region
      _
    $region29: #{tpu_custom_call.1} parent=1 // pred_fallthru
      _
    // Predicated region
    $region30: #{tpu_custom_call.1} parent=1 // pred_check
      _
    $region31: #{tpu_custom_call.1} parent=1 // pred_check_branch
      %51 = sbr.rel (0) target = $region33
    $region32: #{tpu_custom_call.1} parent=1 // pred_region
      _
    $region33: #{tpu_custom_call.1} parent=1 // pred_fallthru
      _
    // Predicated region
    $region34: #{tpu_custom_call.1} parent=1 // pred_check
      _
    $region35: #{tpu_custom_call.1} parent=1 // pred_check_branch
      %53 = sbr.rel (0) target = $region37
    $region36: #{tpu_custom_call.1} parent=1 // pred_region
      _
    $region37: #{tpu_custom_call.1} parent=1 // pred_fallthru
      _
    // Predicated region
    $region38: #{tpu_custom_call.1} parent=1 // pred_check
      _
    $region39: #{tpu_custom_call.1} parent=1 // pred_check_branch
      %55 = sbr.rel (0) target = $region41
    $region40: #{tpu_custom_call.1} parent=1 // pred_region
      %56 = dma.done [#allocation3], 128
    $region41: #{tpu_custom_call.1} parent=1 // pred_fallthru
      _
    // Predicated region
    $region42: #{tpu_custom_call.1} parent=1 // pred_check
      _
    $region43: #{tpu_custom_call.1} parent=1 // pred_check_branch
      %58 = sbr.rel (0) target = $region45
    $region44: #{tpu_custom_call.1} parent=1 // pred_region
      %59 = dma.done [#allocation5], 2048
    $region45: #{tpu_custom_call.1} parent=1 // pred_fallthru
      _
    %v61 = vld [vmem:[#allocation2] sm:$0xf]
    %v62 = vld [vmem:[#allocation2 + $0x4] sm:$0xf]
    %v63 = vld [vmem:[%s1] sm:$0xff]
    %v64 = vld [vmem:[%s1 + $0x8] sm:$0xff]
    %v65 = vld [vmem:[%s1 + $0x10] sm:$0xff]
    %v66 = vld [vmem:[%s1 + $0x18] sm:$0xff]
    %v67 = vld [vmem:[%s1 + $0x20] sm:$0xff]
    %v68 = vld [vmem:[%s1 + $0x28] sm:$0xff]
    %v69 = vld [vmem:[%s1 + $0x30] sm:$0xff]
    %v70 = vld [vmem:[%s1 + $0x38] sm:$0xff]
    %v71 = vld [vmem:[%s1 + $0x40] sm:$0xff]
    %v72 = vld [vmem:[%s1 + $0x48] sm:$0xff]
    %v73 = vld [vmem:[%s1 + $0x50] sm:$0xff]
    %v74 = vld [vmem:[%s1 + $0x58] sm:$0xff]
    %v75 = vld [vmem:[%s1 + $0x60] sm:$0xff]
    %v76 = vld [vmem:[%s1 + $0x68] sm:$0xff]
    %v77 = vld [vmem:[%s1 + $0x70] sm:$0xff]
    %v78 = vld [vmem:[%s1 + $0x78] sm:$0xff]
    %v79 = vld [vmem:[%s2] sm:$0x3]
    %v81 = vlaneseq
    %v82 = vshrl.u32 %v81, 7
    %v83 = vsub.s32 0, %v82
    %v84 = vrot.slane %v79, %v83
    %v85 = vlaneseq
    %v86 = vshrl.u32 %v85, 7
    %v87 = vsub.s32 1, %v86
    %v88 = vrot.slane %v79, %v87
    %v93 = vunpack.c.l.b16 %v61
    %v94 = vunpack.c.l.b16 %v62
    %v95 = vpack.c.b16 %v94, %v93
    %v113 = vunpack.c.l.b16 %v63
    %v114 = vunpack.c.h.b16 %v63
    %v115 = vunpack.c.l.b16 %v64
    %v116 = vunpack.c.h.b16 %v64
    %v117 = vunpack.c.l.b16 %v65
    %v118 = vunpack.c.h.b16 %v65
    %v119 = vunpack.c.l.b16 %v66
    %v120 = vunpack.c.h.b16 %v66
    %v121 = vunpack.c.l.b16 %v67
    %v122 = vunpack.c.h.b16 %v67
    %v123 = vunpack.c.l.b16 %v68
    %v124 = vunpack.c.h.b16 %v68
    %v125 = vunpack.c.l.b16 %v69
    %v126 = vunpack.c.h.b16 %v69
    %v127 = vunpack.c.l.b16 %v70
    %v128 = vunpack.c.h.b16 %v70
    %v129 = vunpack.c.l.b16 %v71
    %v130 = vunpack.c.h.b16 %v71
    %v131 = vunpack.c.l.b16 %v72
    %v132 = vunpack.c.h.b16 %v72
    %v133 = vunpack.c.l.b16 %v73
    %v134 = vunpack.c.h.b16 %v73
    %v135 = vunpack.c.l.b16 %v74
    %v136 = vunpack.c.h.b16 %v74
    %v137 = vunpack.c.l.b16 %v75
    %v138 = vunpack.c.h.b16 %v75
    %v139 = vunpack.c.l.b16 %v76
    %v140 = vunpack.c.h.b16 %v76
    %v141 = vunpack.c.l.b16 %v77
    %v142 = vunpack.c.h.b16 %v77
    %v143 = vunpack.c.l.b16 %v78
    %v144 = vunpack.c.h.b16 %v78
    %v145 = vpack.c.b16 %v115, %v113
    %v146 = vpack.c.b16 %v116, %v114
    %v147 = vpack.c.b16 %v119, %v117
    %v148 = vpack.c.b16 %v120, %v118
    %v149 = vpack.c.b16 %v123, %v121
    %v150 = vpack.c.b16 %v124, %v122
    %v151 = vpack.c.b16 %v127, %v125
    %v152 = vpack.c.b16 %v128, %v126
    %v153 = vpack.c.b16 %v131, %v129
    %v154 = vpack.c.b16 %v132, %v130
    %v155 = vpack.c.b16 %v135, %v133
    %v156 = vpack.c.b16 %v136, %v134
    %v157 = vpack.c.b16 %v139, %v137
    %v158 = vpack.c.b16 %v140, %v138
    %v159 = vpack.c.b16 %v143, %v141
    %v160 = vpack.c.b16 %v144, %v142
    %177 = vmatprep.subr.bf16.mxu0 %v146
    %178 = vmatpush1.bf16.msra.mxu0 %v145
    %179 = vmatprep.subr.bf16.mxu0 %v148
    %180 = vmatpush1.bf16.msra.mxu0 %v147
    %181 = vmatprep.subr.bf16.mxu0 %v150
    %182 = vmatpush1.bf16.msra.mxu0 %v149
    %183 = vmatprep.subr.bf16.mxu0 %v152
    %184 = vmatpush1.bf16.msra.mxu0 %v151
    %185 = vmatprep.subr.bf16.mxu0 %v154
    %186 = vmatpush1.bf16.msra.mxu0 %v153
    %187 = vmatprep.subr.bf16.mxu0 %v156
    %188 = vmatpush1.bf16.msra.mxu0 %v155
    %189 = vmatprep.subr.bf16.mxu0 %v158
    %190 = vmatpush1.bf16.msra.mxu0 %v157
    %191 = vmatprep.subr.bf16.mxu0 %v160
    %192 = vmatpush1.bf16.msra.mxu0 %v159
    %193 = vmatprep.subr.bf16.mxu0 0
    %194 = vmatpush1.bf16.msra.mxu0 0
    %195 = vmatprep.subr.bf16.mxu0 0
    %196 = vmatpush1.bf16.msra.mxu0 0
    %197 = vmatprep.subr.bf16.mxu0 0
    %198 = vmatpush1.bf16.msra.mxu0 0
    %199 = vmatprep.subr.bf16.mxu0 0
    %200 = vmatpush1.bf16.msra.mxu0 0
    %201 = vmatprep.subr.bf16.mxu0 0
    %202 = vmatpush1.bf16.msra.mxu0 0
    %203 = vmatprep.subr.bf16.mxu0 0
    %204 = vmatpush1.bf16.msra.mxu0 0
    %205 = vmatprep.subr.bf16.mxu0 0
    %206 = vmatpush1.bf16.msra.mxu0 0
    %207 = vmatprep.subr.bf16.mxu0 0
    %208 = vmatpush1.bf16.msra.mxu0 0
    %209 = vmatprep.mubr.bf16.mxu0 0
    %210 = vmatmul.mubr.bf16.gmra.mrb[0].mxu0 %v95
    %v211 = vpop.f32.mrb[0].mxu0
    %v212 = vadd.f32 %v84, %v211
    %v213 = vpop.f32.mrb[0].mxu0
    %v214 = vadd.f32 %v88, %v213
    %v215 = vpop.f32.mrb[0].mxu0
    %v216 = vadd.f32 %v84, %v215
    %v217 = vpop.f32.mrb[0].mxu0
    %v218 = vadd.f32 %v88, %v217
    %219 = vdwg.mxu0
    %v220 = vmul.f32 %v212, 0.2
    %v221 = vmul.f32 %v214, 0.2
    %v222 = vmul.f32 %v216, 0.2
    %v223 = vmul.f32 %v218, 0.2
    %v224 = vmax.f32 %v212, %v220
    %v225 = vmax.f32 %v214, %v221
    %v226 = vmax.f32 %v216, %v222
    %v227 = vmax.f32 %v218, %v223
    %v228 = vpack.c.bf16 %v226, %v224
    %v229 = vpack.c.bf16 %v227, %v225
    %v230 = vld [vmem:[#allocation4] sm:$0xf]
    %v231 = vld [vmem:[#allocation4 + $0x4] sm:$0xf]
    %v232 = vld [vmem:[#allocation4 + $0x8] sm:$0xf]
    %v233 = vld [vmem:[#allocation4 + $0xc] sm:$0xf]
    %v234 = vld [vmem:[#allocation4 + $0x10] sm:$0xf]
    %v235 = vld [vmem:[#allocation4 + $0x14] sm:$0xf]
    %v236 = vld [vmem:[#allocation4 + $0x18] sm:$0xf]
    %v237 = vld [vmem:[#allocation4 + $0x1c] sm:$0xf]
    %v238 = vld [vmem:[#allocation4 + $0x20] sm:$0xf]
    %v239 = vld [vmem:[#allocation4 + $0x24] sm:$0xf]
    %v240 = vld [vmem:[#allocation4 + $0x28] sm:$0xf]
    %v241 = vld [vmem:[#allocation4 + $0x2c] sm:$0xf]
    %v242 = vld [vmem:[#allocation4 + $0x30] sm:$0xf]
    %v243 = vld [vmem:[#allocation4 + $0x34] sm:$0xf]
    %v244 = vld [vmem:[#allocation4 + $0x38] sm:$0xf]
    %v245 = vld [vmem:[#allocation4 + $0x3c] sm:$0xf]
    %v246 = vld [vmem:[#allocation4 + $0x40] sm:$0xf]
    %v247 = vld [vmem:[#allocation4 + $0x44] sm:$0xf]
    %v248 = vld [vmem:[#allocation4 + $0x48] sm:$0xf]
    %v249 = vld [vmem:[#allocation4 + $0x4c] sm:$0xf]
    %v250 = vld [vmem:[#allocation4 + $0x50] sm:$0xf]
    %v251 = vld [vmem:[#allocation4 + $0x54] sm:$0xf]
    %v252 = vld [vmem:[#allocation4 + $0x58] sm:$0xf]
    %v253 = vld [vmem:[#allocation4 + $0x5c] sm:$0xf]
    %v254 = vld [vmem:[#allocation4 + $0x60] sm:$0xf]
    %v255 = vld [vmem:[#allocation4 + $0x64] sm:$0xf]
    %v256 = vld [vmem:[#allocation4 + $0x68] sm:$0xf]
    %v257 = vld [vmem:[#allocation4 + $0x6c] sm:$0xf]
    %v258 = vld [vmem:[#allocation4 + $0x70] sm:$0xf]
    %v259 = vld [vmem:[#allocation4 + $0x74] sm:$0xf]
    %v260 = vld [vmem:[#allocation4 + $0x78] sm:$0xf]
    %v261 = vld [vmem:[#allocation4 + $0x7c] sm:$0xf]
    %v262 = vld [vmem:[%s4] sm:$0x1]
    %v264 = vlaneseq
    %v265 = vshrl.u32 %v264, 7
    %v266 = vsub.s32 0, %v265
    %v267 = vrot.slane %v262, %v266
    %v301 = vunpack.c.l.b16 %v230
    %v302 = vunpack.c.l.b16 %v231
    %v303 = vunpack.c.l.b16 %v232
    %v304 = vunpack.c.l.b16 %v233
    %v305 = vunpack.c.l.b16 %v234
    %v306 = vunpack.c.l.b16 %v235
    %v307 = vunpack.c.l.b16 %v236
    %v308 = vunpack.c.l.b16 %v237
    %v309 = vunpack.c.l.b16 %v238
    %v310 = vunpack.c.l.b16 %v239
    %v311 = vunpack.c.l.b16 %v240
    %v312 = vunpack.c.l.b16 %v241
    %v313 = vunpack.c.l.b16 %v242
    %v314 = vunpack.c.l.b16 %v243
    %v315 = vunpack.c.l.b16 %v244
    %v316 = vunpack.c.l.b16 %v245
    %v317 = vunpack.c.l.b16 %v246
    %v318 = vunpack.c.l.b16 %v247
    %v319 = vunpack.c.l.b16 %v248
    %v320 = vunpack.c.l.b16 %v249
    %v321 = vunpack.c.l.b16 %v250
    %v322 = vunpack.c.l.b16 %v251
    %v323 = vunpack.c.l.b16 %v252
    %v324 = vunpack.c.l.b16 %v253
    %v325 = vunpack.c.l.b16 %v254
    %v326 = vunpack.c.l.b16 %v255
    %v327 = vunpack.c.l.b16 %v256
    %v328 = vunpack.c.l.b16 %v257
    %v329 = vunpack.c.l.b16 %v258
    %v330 = vunpack.c.l.b16 %v259
    %v331 = vunpack.c.l.b16 %v260
    %v332 = vunpack.c.l.b16 %v261
    %v333 = vpack.c.b16 %v302, %v301
    %v334 = vpack.c.b16 %v304, %v303
    %v335 = vpack.c.b16 %v306, %v305
    %v336 = vpack.c.b16 %v308, %v307
    %v337 = vpack.c.b16 %v310, %v309
    %v338 = vpack.c.b16 %v312, %v311
    %v339 = vpack.c.b16 %v314, %v313
    %v340 = vpack.c.b16 %v316, %v315
    %v341 = vpack.c.b16 %v318, %v317
    %v342 = vpack.c.b16 %v320, %v319
    %v343 = vpack.c.b16 %v322, %v321
    %v344 = vpack.c.b16 %v324, %v323
    %v345 = vpack.c.b16 %v326, %v325
    %v346 = vpack.c.b16 %v328, %v327
    %v347 = vpack.c.b16 %v330, %v329
    %v348 = vpack.c.b16 %v332, %v331
    %365 = vmatprep.subr.bf16.mxu0 0
    %366 = vmatpush1.bf16.msra.mxu0 %v333
    %367 = vmatprep.subr.bf16.mxu0 0
    %368 = vmatpush1.bf16.msra.mxu0 %v334
    %369 = vmatprep.subr.bf16.mxu0 0
    %370 = vmatpush1.bf16.msra.mxu0 %v335
    %371 = vmatprep.subr.bf16.mxu0 0
    %372 = vmatpush1.bf16.msra.mxu0 %v336
    %373 = vmatprep.subr.bf16.mxu0 0
    %374 = vmatpush1.bf16.msra.mxu0 %v337
    %375 = vmatprep.subr.bf16.mxu0 0
    %376 = vmatpush1.bf16.msra.mxu0 %v338
    %377 = vmatprep.subr.bf16.mxu0 0
    %378 = vmatpush1.bf16.msra.mxu0 %v339
    %379 = vmatprep.subr.bf16.mxu0 0
    %380 = vmatpush1.bf16.msra.mxu0 %v340
    %381 = vmatprep.subr.bf16.mxu0 0
    %382 = vmatpush1.bf16.msra.mxu0 %v341
    %383 = vmatprep.subr.bf16.mxu0 0
    %384 = vmatpush1.bf16.msra.mxu0 %v342
    %385 = vmatprep.subr.bf16.mxu0 0
    %386 = vmatpush1.bf16.msra.mxu0 %v343
    %387 = vmatprep.subr.bf16.mxu0 0
    %388 = vmatpush1.bf16.msra.mxu0 %v344
    %389 = vmatprep.subr.bf16.mxu0 0
    %390 = vmatpush1.bf16.msra.mxu0 %v345
    %391 = vmatprep.subr.bf16.mxu0 0
    %392 = vmatpush1.bf16.msra.mxu0 %v346
    %393 = vmatprep.subr.bf16.mxu0 0
    %394 = vmatpush1.bf16.msra.mxu0 %v347
    %395 = vmatprep.subr.bf16.mxu0 0
    %396 = vmatpush1.bf16.msra.mxu0 %v348
    %397 = vmatprep.mubr.bf16.mxu0 %v229
    %398 = vmatmul.mubr.bf16.gmra.mrb[0].mxu0 %v228
    %v399 = vpop.f32.mrb[0].mxu0
    %v400 = vadd.f32 %v267, %v399
    %v401 = vpop.f32.mrb[0].mxu0
    %v402 = vpop.f32.mrb[0].mxu0
    %v403 = vadd.f32 %v267, %v402
    %v404 = vpop.f32.mrb[0].mxu0
    %405 = vdwg.mxu0
    %v406 = vmul.f32 %v400, 0.2
    %v407 = vmul.f32 %v403, 0.2
    %v408 = vmax.f32 %v400, %v406
    %v409 = vmax.f32 %v403, %v407
    %v410 = vpack.c.bf16 %v409, %v408
    %v411 = vld [vmem:[%s5] sm:$0xf]
    %v412 = vld [vmem:[%s5 + $0x4] sm:$0xf]
    %v413 = vld [vmem:[%s5 + $0x8] sm:$0xf]
    %v414 = vld [vmem:[%s5 + $0xc] sm:$0xf]
    %v415 = vld [vmem:[%s5 + $0x10] sm:$0xf]
    %v416 = vld [vmem:[%s5 + $0x14] sm:$0xf]
    %v417 = vld [vmem:[%s5 + $0x18] sm:$0xf]
    %v418 = vld [vmem:[%s5 + $0x1c] sm:$0xf]
    %v419 = vld [vmem:[%s5 + $0x20] sm:$0xf]
    %v420 = vld [vmem:[%s5 + $0x24] sm:$0xf]
    %v421 = vld [vmem:[%s5 + $0x28] sm:$0xf]
    %v422 = vld [vmem:[%s5 + $0x2c] sm:$0xf]
    %v423 = vld [vmem:[%s5 + $0x30] sm:$0xf]
    %v424 = vld [vmem:[%s5 + $0x34] sm:$0xf]
    %v425 = vld [vmem:[%s5 + $0x38] sm:$0xf]
    %v426 = vld [vmem:[%s5 + $0x3c] sm:$0xf]
    %v427 = vld [vmem:[%s6] sm:$0x1]
    %v429 = vlaneseq
    %v430 = vshrl.u32 %v429, 7
    %v431 = vsub.s32 0, %v430
    %v432 = vrot.slane %v427, %v431
    %v450 = vunpack.c.l.b16 %v411
    %v451 = vunpack.c.l.b16 %v412
    %v452 = vunpack.c.l.b16 %v413
    %v453 = vunpack.c.l.b16 %v414
    %v454 = vunpack.c.l.b16 %v415
    %v455 = vunpack.c.l.b16 %v416
    %v456 = vunpack.c.l.b16 %v417
    %v457 = vunpack.c.l.b16 %v418
    %v458 = vunpack.c.l.b16 %v419
    %v459 = vunpack.c.l.b16 %v420
    %v460 = vunpack.c.l.b16 %v421
    %v461 = vunpack.c.l.b16 %v422
    %v462 = vunpack.c.l.b16 %v423
    %v463 = vunpack.c.l.b16 %v424
    %v464 = vunpack.c.l.b16 %v425
    %v465 = vunpack.c.l.b16 %v426
    %v466 = vpack.c.b16 %v451, %v450
    %v467 = vpack.c.b16 %v453, %v452
    %v468 = vpack.c.b16 %v455, %v454
    %v469 = vpack.c.b16 %v457, %v456
    %v470 = vpack.c.b16 %v459, %v458
    %v471 = vpack.c.b16 %v461, %v460
    %v472 = vpack.c.b16 %v463, %v462
    %v473 = vpack.c.b16 %v465, %v464
    %482 = vmatprep.subr.bf16.mxu0 0
    %483 = vmatpush1.bf16.msra.mxu0 %v466
    %484 = vmatprep.subr.bf16.mxu0 0
    %485 = vmatpush1.bf16.msra.mxu0 %v467
    %486 = vmatprep.subr.bf16.mxu0 0
    %487 = vmatpush1.bf16.msra.mxu0 %v468
    %488 = vmatprep.subr.bf16.mxu0 0
    %489 = vmatpush1.bf16.msra.mxu0 %v469
    %490 = vmatprep.subr.bf16.mxu0 0
    %491 = vmatpush1.bf16.msra.mxu0 %v470
    %492 = vmatprep.subr.bf16.mxu0 0
    %493 = vmatpush1.bf16.msra.mxu0 %v471
    %494 = vmatprep.subr.bf16.mxu0 0
    %495 = vmatpush1.bf16.msra.mxu0 %v472
    %496 = vmatprep.subr.bf16.mxu0 0
    %497 = vmatpush1.bf16.msra.mxu0 %v473
    %498 = vmatprep.subr.bf16.mxu0 0
    %499 = vmatpush1.bf16.msra.mxu0 0
    %500 = vmatprep.subr.bf16.mxu0 0
    %501 = vmatpush1.bf16.msra.mxu0 0
    %502 = vmatprep.subr.bf16.mxu0 0
    %503 = vmatpush1.bf16.msra.mxu0 0
    %504 = vmatprep.subr.bf16.mxu0 0
    %505 = vmatpush1.bf16.msra.mxu0 0
    %506 = vmatprep.subr.bf16.mxu0 0
    %507 = vmatpush1.bf16.msra.mxu0 0
    %508 = vmatprep.subr.bf16.mxu0 0
    %509 = vmatpush1.bf16.msra.mxu0 0
    %510 = vmatprep.subr.bf16.mxu0 0
    %511 = vmatpush1.bf16.msra.mxu0 0
    %512 = vmatprep.subr.bf16.mxu0 0
    %513 = vmatpush1.bf16.msra.mxu0 0
    %514 = vmatprep.mubr.bf16.mxu0 0
    %515 = vmatmul.mubr.bf16.gmra.mrb[0].mxu0 %v410
    %v516 = vpop.f32.mrb[0].mxu0
    %v517 = vadd.f32 %v432, %v516
    %v518 = vpop.f32.mrb[0].mxu0
    %v519 = vpop.f32.mrb[0].mxu0
    %v520 = vadd.f32 %v432, %v519
    %v521 = vpop.f32.mrb[0].mxu0
    %522 = vdwg.mxu0
    %v523 = vmul.f32 %v517, 0.2
    %v524 = vmul.f32 %v520, 0.2
    %v525 = vmax.f32 %v517, %v523
    %v526 = vmax.f32 %v520, %v524
    %v527 = vpack.c.bf16 %v526, %v525
    %v528 = vld [vmem:[%s7] sm:$0xf]
    %v529 = vld [vmem:[%s7 + $0x4] sm:$0xf]
    %v530 = vld [vmem:[%s7 + $0x8] sm:$0xf]
    %v531 = vld [vmem:[%s7 + $0xc] sm:$0xf]
    %v532 = vld [vmem:[%s7 + $0x10] sm:$0xf]
    %v533 = vld [vmem:[%s7 + $0x14] sm:$0xf]
    %v534 = vld [vmem:[%s7 + $0x18] sm:$0xf]
    %v535 = vld [vmem:[%s7 + $0x1c] sm:$0xf]
    %v536 = vld [vmem:[%s8] sm:$0x1]
    %v538 = vlaneseq
    %v539 = vshrl.u32 %v538, 7
    %v540 = vsub.s32 0, %v539
    %v541 = vrot.slane %v536, %v540
    %v551 = vunpack.c.l.b16 %v528
    %v552 = vunpack.c.l.b16 %v529
    %v553 = vunpack.c.l.b16 %v530
    %v554 = vunpack.c.l.b16 %v531
    %v555 = vunpack.c.l.b16 %v532
    %v556 = vunpack.c.l.b16 %v533
    %v557 = vunpack.c.l.b16 %v534
    %v558 = vunpack.c.l.b16 %v535
    %v559 = vpack.c.b16 %v552, %v551
    %v560 = vpack.c.b16 %v554, %v553
    %v561 = vpack.c.b16 %v556, %v555
    %v562 = vpack.c.b16 %v558, %v557
    %vm567 = vcmask 523264
    %v569 = vsel %vm567, %v527, 0
    %571 = vmatprep.subr.bf16.mxu0 0
    %572 = vmatpush1.bf16.msra.mxu0 %v559
    %573 = vmatprep.subr.bf16.mxu0 0
    %574 = vmatpush1.bf16.msra.mxu0 %v560
    %575 = vmatprep.subr.bf16.mxu0 0
    %576 = vmatpush1.bf16.msra.mxu0 %v561
    %577 = vmatprep.subr.bf16.mxu0 0
    %578 = vmatpush1.bf16.msra.mxu0 %v562
    %579 = vmatprep.subr.bf16.mxu0 0
    %580 = vmatpush1.bf16.msra.mxu0 0
    %581 = vmatprep.subr.bf16.mxu0 0
    %582 = vmatpush1.bf16.msra.mxu0 0
    %583 = vmatprep.subr.bf16.mxu0 0
    %584 = vmatpush1.bf16.msra.mxu0 0
    %585 = vmatprep.subr.bf16.mxu0 0
    %586 = vmatpush1.bf16.msra.mxu0 0
    %587 = vmatprep.subr.bf16.mxu0 0
    %588 = vmatpush1.bf16.msra.mxu0 0
    %589 = vmatprep.subr.bf16.mxu0 0
    %590 = vmatpush1.bf16.msra.mxu0 0
    %591 = vmatprep.subr.bf16.mxu0 0
    %592 = vmatpush1.bf16.msra.mxu0 0
    %593 = vmatprep.subr.bf16.mxu0 0
    %594 = vmatpush1.bf16.msra.mxu0 0
    %595 = vmatprep.subr.bf16.mxu0 0
    %596 = vmatpush1.bf16.msra.mxu0 0
    %597 = vmatprep.subr.bf16.mxu0 0
    %598 = vmatpush1.bf16.msra.mxu0 0
    %599 = vmatprep.subr.bf16.mxu0 0
    %600 = vmatpush1.bf16.msra.mxu0 0
    %601 = vmatprep.subr.bf16.mxu0 0
    %602 = vmatpush1.bf16.msra.mxu0 0
    %603 = vmatprep.mubr.bf16.mxu0 0
    %604 = vmatmul.mubr.bf16.gmra.mrb[0].mxu0 %v569
    %v605 = vpop.f32.mrb[0].mxu0
    %v606 = vadd.f32 %v541, %v605
    %v607 = vpop.f32.mrb[0].mxu0
    %v608 = vpop.f32.mrb[0].mxu0
    %v609 = vadd.f32 %v541, %v608
    %v610 = vpop.f32.mrb[0].mxu0
    %611 = vdwg.mxu0
    %vm612 = vcmask 15360
    %613 = vst.msk [vmem:[%s9] sm:$0xff] %vm612, %v606
    %614 = vst.msk [vmem:[%s9 + $0x8] sm:$0xff] %vm612, %v609
    // Predicated region
    $region46: #{tpu_custom_call.1} parent=1 // pred_check
      _
    $region47: #{tpu_custom_call.1} parent=1 // pred_check_branch
      %616 = sbr.rel (0) target = $region49
    $region48: #{tpu_custom_call.1} parent=1 // pred_region
      _
    $region49: #{tpu_custom_call.1} parent=1 // pred_fallthru
      _
    // Predicated region
    $region50: #{tpu_custom_call.1} parent=1 // pred_check
      _
    $region51: #{tpu_custom_call.1} parent=1 // pred_check_branch
      %618 = sbr.rel (0) target = $region53
    $region52: #{tpu_custom_call.1} parent=1 // pred_region
      _
    $region53: #{tpu_custom_call.1} parent=1 // pred_fallthru
      _
    %619 = vsyncpa [#allocation3], 1
    %620 = vsyncpa [#allocation5], 1

// kernel: tpu_custom_call.1
$region0: #{tpu_custom_call.1}
  #allocation0 [shape = 'u32[]', space=smem, size = 0x4, offset = 0x4, fixed_abs, tag = 'smem constant byte address 0x4 - core index']
  #allocation1 [shape = 'u32[144,128]{1,0:T(1,128)}', space=vmem, size = 0x12000, scoped, tag = 'internal scratch']
  %s0 = inlined_call_operand.hbm [shape: bf16[16,128], index: 0, kind: input, shape index: {}]
  %s1 = inlined_call_operand.vmem [shape: bf16[128,256], index: 1, kind: input, shape index: {}]
  %s2 = inlined_call_operand.vmem [shape: f32[1,256], index: 2, kind: input, shape index: {}]
  %s3 = inlined_call_operand.hbm [shape: bf16[256,128], index: 3, kind: input, shape index: {}]
  %s4 = inlined_call_operand.vmem [shape: f32[1,128], index: 4, kind: input, shape index: {}]
  %s5 = inlined_call_operand.vmem [shape: bf16[128,64], index: 5, kind: input, shape index: {}]
  %s6 = inlined_call_operand.vmem [shape: f32[1,64], index: 6, kind: input, shape index: {}]
  %s7 = inlined_call_operand.vmem [shape: bf16[64,2], index: 7, kind: input, shape index: {}]
  %s8 = inlined_call_operand.vmem [shape: f32[1,2], index: 8, kind: input, shape index: {}]
  %s9 = inlined_call_operand.vmem [shape: f32[16,2], index: 9, kind: output, shape index: {}]
  %s10 = sld [smem:[#allocation0]]
  $region54: #{tpu_custom_call.1} parent=0
    _
  %s12 = ssub.s32 1, %s10
  %s13 = scalar_select 0, %s12, %s10
  $region1: #{tpu_custom_call.1} parent=0
    #allocation2 [shape = 'u8[4096]{0}', space=vmem, size = 0x1000, scoped, tag = 'input window, operand 0, single buffered']
    #allocation3 [shape = 's32[1]{0}', space=sflag, size = 0x4, scoped, tag = 'scoped memory for tpu_custom_call.1']
    #allocation4 [shape = 'u8[65536]{0}', space=vmem, size = 0x10000, scoped, tag = 'input window, operand 3, single buffered']
    #allocation5 [shape = 's32[1]{0}', space=sflag, size = 0x4, scoped, tag = 'scoped memory for tpu_custom_call.1']
    %14 = vsyncpa [#allocation3], 0
    %15 = vsyncpa [#allocation5], 0
    // Predicated region
    $region2: #{tpu_custom_call.1} parent=1 // pred_check
      _
    $region3: #{tpu_custom_call.1} parent=1 // pred_check_branch
      %17 = sbr.rel (0) target = $region5
    $region4: #{tpu_custom_call.1} parent=1 // pred_region
      %s19 = ssub.s32 128, 128
      %20 = vsyncadd [#allocation3], %s19
      %s21 = sshll.u32 [#allocation2], 4
      %s22 = int_to_ptr.vmem [resolvable:$true] %s21
      %27 = dma.hbm_to_vmem [thread:$0]  %s0, 128, %s22, [#allocation3], 64, 64, 4
    $region5: #{tpu_custom_call.1} parent=1 // pred_fallthru
      _
    // Predicated region
    $region6: #{tpu_custom_call.1} parent=1 // pred_check
      _
    $region7: #{tpu_custom_call.1} parent=1 // pred_check_branch
      %29 = sbr.rel (0) target = $region9
    $region8: #{tpu_custom_call.1} parent=1 // pred_region
      _
    $region9: #{tpu_custom_call.1} parent=1 // pred_fallthru
      _
    // Predicated region
    $region10: #{tpu_custom_call.1} parent=1 // pred_check
      _
    $region11: #{tpu_custom_call.1} parent=1 // pred_check_branch
      %31 = sbr.rel (0) target = $region13
    $region12: #{tpu_custom_call.1} parent=1 // pred_region
      _
    $region13: #{tpu_custom_call.1} parent=1 // pred_fallthru
      _
    // Predicated region
    $region14: #{tpu_custom_call.1} parent=1 // pred_check
      _
    $region15: #{tpu_custom_call.1} parent=1 // pred_check_branch
      %33 = sbr.rel (0) target = $region17
    $region16: #{tpu_custom_call.1} parent=1 // pred_region
      %s35 = ssub.s32 2048, 2048
      %36 = vsyncadd [#allocation5], %s35
      %s37 = sshll.u32 [#allocation4], 4
      %s38 = int_to_ptr.vmem [resolvable:$true] %s37
      %43 = dma.hbm_to_vmem [thread:$0]  %s3, 2048, %s38, [#allocation5], 64, 64, 4
    $region17: #{tpu_custom_call.1} parent=1 // pred_fallthru
      _
    // Predicated region
    $region18: #{tpu_custom_call.1} parent=1 // pred_check
      _
    $region19: #{tpu_custom_call.1} parent=1 // pred_check_branch
      %45 = sbr.rel (0) target = $region21
    $region20: #{tpu_custom_call.1} parent=1 // pred_region
      _
    $region21: #{tpu_custom_call.1} parent=1 // pred_fallthru
      _
    // Predicated region
    $region22: #{tpu_custom_call.1} parent=1 // pred_check
      _
    $region23: #{tpu_custom_call.1} parent=1 // pred_check_branch
      %47 = sbr.rel (0) target = $region25
    $region24: #{tpu_custom_call.1} parent=1 // pred_region
      _
    $region25: #{tpu_custom_call.1} parent=1 // pred_fallthru
      _
    // Predicated region
    $region26: #{tpu_custom_call.1} parent=1 // pred_check
      _
    $region27: #{tpu_custom_call.1} parent=1 // pred_check_branch
      %49 = sbr.rel (0) target = $region29
    $region28: #{tpu_custom_call.1} parent=1 // pred_region
      _
    $region29: #{tpu_custom_call.1} parent=1 // pred_fallthru
      _
    // Predicated region
    $region30: #{tpu_custom_call.1} parent=1 // pred_check
      _
    $region31: #{tpu_custom_call.1} parent=1 // pred_check_branch
      %51 = sbr.rel (0) target = $region33
    $region32: #{tpu_custom_call.1} parent=1 // pred_region
      _
    $region33: #{tpu_custom_call.1} parent=1 // pred_fallthru
      _
    // Predicated region
    $region34: #{tpu_custom_call.1} parent=1 // pred_check
      _
    $region35: #{tpu_custom_call.1} parent=1 // pred_check_branch
      %53 = sbr.rel (0) target = $region37
    $region36: #{tpu_custom_call.1} parent=1 // pred_region
      _
    $region37: #{tpu_custom_call.1} parent=1 // pred_fallthru
      _
    // Predicated region
    $region38: #{tpu_custom_call.1} parent=1 // pred_check
      _
    $region39: #{tpu_custom_call.1} parent=1 // pred_check_branch
      %55 = sbr.rel (0) target = $region41
    $region40: #{tpu_custom_call.1} parent=1 // pred_region
      %56 = dma.done [#allocation3], 128
    $region41: #{tpu_custom_call.1} parent=1 // pred_fallthru
      _
    // Predicated region
    $region42: #{tpu_custom_call.1} parent=1 // pred_check
      _
    $region43: #{tpu_custom_call.1} parent=1 // pred_check_branch
      %58 = sbr.rel (0) target = $region45
    $region44: #{tpu_custom_call.1} parent=1 // pred_region
      %59 = dma.done [#allocation5], 2048
    $region45: #{tpu_custom_call.1} parent=1 // pred_fallthru
      _
    %v61 = vld [vmem:[#allocation2] sm:$0xf]
    %v62 = vld [vmem:[#allocation2 + $0x4] sm:$0xf]
    %v63 = vld [vmem:[%s1] sm:$0xff]
    %v64 = vld [vmem:[%s1 + $0x8] sm:$0xff]
    %v65 = vld [vmem:[%s1 + $0x10] sm:$0xff]
    %v66 = vld [vmem:[%s1 + $0x18] sm:$0xff]
    %v67 = vld [vmem:[%s1 + $0x20] sm:$0xff]
    %v68 = vld [vmem:[%s1 + $0x28] sm:$0xff]
    %v69 = vld [vmem:[%s1 + $0x30] sm:$0xff]
    %v70 = vld [vmem:[%s1 + $0x38] sm:$0xff]
    %v71 = vld [vmem:[%s1 + $0x40] sm:$0xff]
    %v72 = vld [vmem:[%s1 + $0x48] sm:$0xff]
    %v73 = vld [vmem:[%s1 + $0x50] sm:$0xff]
    %v74 = vld [vmem:[%s1 + $0x58] sm:$0xff]
    %v75 = vld [vmem:[%s1 + $0x60] sm:$0xff]
    %v76 = vld [vmem:[%s1 + $0x68] sm:$0xff]
    %v77 = vld [vmem:[%s1 + $0x70] sm:$0xff]
    %v78 = vld [vmem:[%s1 + $0x78] sm:$0xff]
    %v79 = vld [vmem:[%s2] sm:$0x3]
    %v81 = vlaneseq
    %v82 = vshrl.u32 %v81, 7
    %v83 = vsub.s32 0, %v82
    %v84 = vrot.slane %v79, %v83
    %v85 = vlaneseq
    %v86 = vshrl.u32 %v85, 7
    %v87 = vsub.s32 1, %v86
    %v88 = vrot.slane %v79, %v87
    %v93 = vunpack.c.l.b16 %v61
    %v94 = vunpack.c.l.b16 %v62
    %v95 = vpack.c.b16 %v94, %v93
    %v113 = vunpack.c.l.b16 %v63
    %v114 = vunpack.c.h.b16 %v63
    %v115 = vunpack.c.l.b16 %v64
    %v116 = vunpack.c.h.b16 %v64
    %v117 = vunpack.c.l.b16 %v65
    %v118 = vunpack.c.h.b16 %v65
    %v119 = vunpack.c.l.b16 %v66
    %v120 = vunpack.c.h.b16 %v66
    %v121 = vunpack.c.l.b16 %v67
    %v122 = vunpack.c.h.b16 %v67
    %v123 = vunpack.c.l.b16 %v68
    %v124 = vunpack.c.h.b16 %v68
    %v125 = vunpack.c.l.b16 %v69
    %v126 = vunpack.c.h.b16 %v69
    %v127 = vunpack.c.l.b16 %v70
    %v128 = vunpack.c.h.b16 %v70
    %v129 = vunpack.c.l.b16 %v71
    %v130 = vunpack.c.h.b16 %v71
    %v131 = vunpack.c.l.b16 %v72
    %v132 = vunpack.c.h.b16 %v72
    %v133 = vunpack.c.l.b16 %v73
    %v134 = vunpack.c.h.b16 %v73
    %v135 = vunpack.c.l.b16 %v74
    %v136 = vunpack.c.h.b16 %v74
    %v137 = vunpack.c.l.b16 %v75
    %v138 = vunpack.c.h.b16 %v75
    %v139 = vunpack.c.l.b16 %v76
    %v140 = vunpack.c.h.b16 %v76
    %v141 = vunpack.c.l.b16 %v77
    %v142 = vunpack.c.h.b16 %v77
    %v143 = vunpack.c.l.b16 %v78
    %v144 = vunpack.c.h.b16 %v78
    %v145 = vpack.c.b16 %v115, %v113
    %v146 = vpack.c.b16 %v116, %v114
    %v147 = vpack.c.b16 %v119, %v117
    %v148 = vpack.c.b16 %v120, %v118
    %v149 = vpack.c.b16 %v123, %v121
    %v150 = vpack.c.b16 %v124, %v122
    %v151 = vpack.c.b16 %v127, %v125
    %v152 = vpack.c.b16 %v128, %v126
    %v153 = vpack.c.b16 %v131, %v129
    %v154 = vpack.c.b16 %v132, %v130
    %v155 = vpack.c.b16 %v135, %v133
    %v156 = vpack.c.b16 %v136, %v134
    %v157 = vpack.c.b16 %v139, %v137
    %v158 = vpack.c.b16 %v140, %v138
    %v159 = vpack.c.b16 %v143, %v141
    %v160 = vpack.c.b16 %v144, %v142
    %177 = vmatprep.subr.bf16.mxu0 %v146
    %178 = vmatpush1.bf16.msra.mxu0 %v145
    %179 = vmatprep.subr.bf16.mxu0 %v148
    %180 = vmatpush1.bf16.msra.mxu0 %v147
    %181 = vmatprep.subr.bf16.mxu0 %v150
    %182 = vmatpush1.bf16.msra.mxu0 %v149
    %183 = vmatprep.subr.bf16.mxu0 %v152
    %184 = vmatpush1.bf16.msra.mxu0 %v151
    %185 = vmatprep.subr.bf16.mxu0 %v154
    %186 = vmatpush1.bf16.msra.mxu0 %v153
    %187 = vmatprep.subr.bf16.mxu0 %v156
    %188 = vmatpush1.bf16.msra.mxu0 %v155
    %189 = vmatprep.subr.bf16.mxu0 %v158
    %190 = vmatpush1.bf16.msra.mxu0 %v157
    %191 = vmatprep.subr.bf16.mxu0 %v160
    %192 = vmatpush1.bf16.msra.mxu0 %v159
    %193 = vmatprep.subr.bf16.mxu0 0
    %194 = vmatpush1.bf16.msra.mxu0 0
    %195 = vmatprep.subr.bf16.mxu0 0
    %196 = vmatpush1.bf16.msra.mxu0 0
    %197 = vmatprep.subr.bf16.mxu0 0
    %198 = vmatpush1.bf16.msra.mxu0 0
    %199 = vmatprep.subr.bf16.mxu0 0
    %200 = vmatpush1.bf16.msra.mxu0 0
    %201 = vmatprep.subr.bf16.mxu0 0
    %202 = vmatpush1.bf16.msra.mxu0 0
    %203 = vmatprep.subr.bf16.mxu0 0
    %204 = vmatpush1.bf16.msra.mxu0 0
    %205 = vmatprep.subr.bf16.mxu0 0
    %206 = vmatpush1.bf16.msra.mxu0 0
    %207 = vmatprep.subr.bf16.mxu0 0
    %208 = vmatpush1.bf16.msra.mxu0 0
    %209 = vmatprep.mubr.bf16.mxu0 0
    %210 = vmatmul.mubr.bf16.gmra.mrb[0].mxu0 %v95
    %v211 = vpop.f32.mrb[0].mxu0
    %v212 = vadd.f32 %v84, %v211
    %v213 = vpop.f32.mrb[0].mxu0
    %v214 = vadd.f32 %v88, %v213
    %v215 = vpop.f32.mrb[0].mxu0
    %v216 = vadd.f32 %v84, %v215
    %v217 = vpop.f32.mrb[0].mxu0
    %v218 = vadd.f32 %v88, %v217
    %219 = vdwg.mxu0
    %v220 = vmul.f32 %v212, 0.2
    %v221 = vmul.f32 %v214, 0.2
    %v222 = vmul.f32 %v216, 0.2
    %v223 = vmul.f32 %v218, 0.2
    %v224 = vmax.f32 %v212, %v220
    %v225 = vmax.f32 %v214, %v221
    %v226 = vmax.f32 %v216, %v222
    %v227 = vmax.f32 %v218, %v223
    %v228 = vpack.c.bf16 %v226, %v224
    %v229 = vpack.c.bf16 %v227, %v225
    %v230 = vld [vmem:[#allocation4] sm:$0xf]
    %v231 = vld [vmem:[#allocation4 + $0x4] sm:$0xf]
    %v232 = vld [vmem:[#allocation4 + $0x8] sm:$0xf]
    %v233 = vld [vmem:[#allocation4 + $0xc] sm:$0xf]
    %v234 = vld [vmem:[#allocation4 + $0x10] sm:$0xf]
    %v235 = vld [vmem:[#allocation4 + $0x14] sm:$0xf]
    %v236 = vld [vmem:[#allocation4 + $0x18] sm:$0xf]
    %v237 = vld [vmem:[#allocation4 + $0x1c] sm:$0xf]
    %v238 = vld [vmem:[#allocation4 + $0x20] sm:$0xf]
    %v239 = vld [vmem:[#allocation4 + $0x24] sm:$0xf]
    %v240 = vld [vmem:[#allocation4 + $0x28] sm:$0xf]
    %v241 = vld [vmem:[#allocation4 + $0x2c] sm:$0xf]
    %v242 = vld [vmem:[#allocation4 + $0x30] sm:$0xf]
    %v243 = vld [vmem:[#allocation4 + $0x34] sm:$0xf]
    %v244 = vld [vmem:[#allocation4 + $0x38] sm:$0xf]
    %v245 = vld [vmem:[#allocation4 + $0x3c] sm:$0xf]
    %v246 = vld [vmem:[#allocation4 + $0x40] sm:$0xf]
    %v247 = vld [vmem:[#allocation4 + $0x44] sm:$0xf]
    %v248 = vld [vmem:[#allocation4 + $0x48] sm:$0xf]
    %v249 = vld [vmem:[#allocation4 + $0x4c] sm:$0xf]
    %v250 = vld [vmem:[#allocation4 + $0x50] sm:$0xf]
    %v251 = vld [vmem:[#allocation4 + $0x54] sm:$0xf]
    %v252 = vld [vmem:[#allocation4 + $0x58] sm:$0xf]
    %v253 = vld [vmem:[#allocation4 + $0x5c] sm:$0xf]
    %v254 = vld [vmem:[#allocation4 + $0x60] sm:$0xf]
    %v255 = vld [vmem:[#allocation4 + $0x64] sm:$0xf]
    %v256 = vld [vmem:[#allocation4 + $0x68] sm:$0xf]
    %v257 = vld [vmem:[#allocation4 + $0x6c] sm:$0xf]
    %v258 = vld [vmem:[#allocation4 + $0x70] sm:$0xf]
    %v259 = vld [vmem:[#allocation4 + $0x74] sm:$0xf]
    %v260 = vld [vmem:[#allocation4 + $0x78] sm:$0xf]
    %v261 = vld [vmem:[#allocation4 + $0x7c] sm:$0xf]
    %v262 = vld [vmem:[%s4] sm:$0x1]
    %v264 = vlaneseq
    %v265 = vshrl.u32 %v264, 7
    %v266 = vsub.s32 0, %v265
    %v267 = vrot.slane %v262, %v266
    %v301 = vunpack.c.l.b16 %v230
    %v302 = vunpack.c.l.b16 %v231
    %v303 = vunpack.c.l.b16 %v232
    %v304 = vunpack.c.l.b16 %v233
    %v305 = vunpack.c.l.b16 %v234
    %v306 = vunpack.c.l.b16 %v235
    %v307 = vunpack.c.l.b16 %v236
    %v308 = vunpack.c.l.b16 %v237
    %v309 = vunpack.c.l.b16 %v238
    %v310 = vunpack.c.l.b16 %v239
    %v311 = vunpack.c.l.b16 %v240
    %v312 = vunpack.c.l.b16 %v241
    %v313 = vunpack.c.l.b16 %v242
    %v314 = vunpack.c.l.b16 %v243
    %v315 = vunpack.c.l.b16 %v244
    %v316 = vunpack.c.l.b16 %v245
    %v317 = vunpack.c.l.b16 %v246
    %v318 = vunpack.c.l.b16 %v247
    %v319 = vunpack.c.l.b16 %v248
    %v320 = vunpack.c.l.b16 %v249
    %v321 = vunpack.c.l.b16 %v250
    %v322 = vunpack.c.l.b16 %v251
    %v323 = vunpack.c.l.b16 %v252
    %v324 = vunpack.c.l.b16 %v253
    %v325 = vunpack.c.l.b16 %v254
    %v326 = vunpack.c.l.b16 %v255
    %v327 = vunpack.c.l.b16 %v256
    %v328 = vunpack.c.l.b16 %v257
    %v329 = vunpack.c.l.b16 %v258
    %v330 = vunpack.c.l.b16 %v259
    %v331 = vunpack.c.l.b16 %v260
    %v332 = vunpack.c.l.b16 %v261
    %v333 = vpack.c.b16 %v302, %v301
    %v334 = vpack.c.b16 %v304, %v303
    %v335 = vpack.c.b16 %v306, %v305
    %v336 = vpack.c.b16 %v308, %v307
    %v337 = vpack.c.b16 %v310, %v309
    %v338 = vpack.c.b16 %v312, %v311
    %v339 = vpack.c.b16 %v314, %v313
    %v340 = vpack.c.b16 %v316, %v315
    %v341 = vpack.c.b16 %v318, %v317
    %v342 = vpack.c.b16 %v320, %v319
    %v343 = vpack.c.b16 %v322, %v321
    %v344 = vpack.c.b16 %v324, %v323
    %v345 = vpack.c.b16 %v326, %v325
    %v346 = vpack.c.b16 %v328, %v327
    %v347 = vpack.c.b16 %v330, %v329
    %v348 = vpack.c.b16 %v332, %v331
    %365 = vmatprep.subr.bf16.mxu0 0
    %366 = vmatpush1.bf16.msra.mxu0 %v333
    %367 = vmatprep.subr.bf16.mxu0 0
    %368 = vmatpush1.bf16.msra.mxu0 %v334
    %369 = vmatprep.subr.bf16.mxu0 0
    %370 = vmatpush1.bf16.msra.mxu0 %v335
    %371 = vmatprep.subr.bf16.mxu0 0
    %372 = vmatpush1.bf16.msra.mxu0 %v336
    %373 = vmatprep.subr.bf16.mxu0 0
    %374 = vmatpush1.bf16.msra.mxu0 %v337
    %375 = vmatprep.subr.bf16.mxu0 0
    %376 = vmatpush1.bf16.msra.mxu0 %v338
    %377 = vmatprep.subr.bf16.mxu0 0
    %378 = vmatpush1.bf16.msra.mxu0 %v339
    %379 = vmatprep.subr.bf16.mxu0 0
    %380 = vmatpush1.bf16.msra.mxu0 %v340
    %381 = vmatprep.subr.bf16.mxu0 0
    %382 = vmatpush1.bf16.msra.mxu0 %v341
    %383 = vmatprep.subr.bf16.mxu0 0
    %384 = vmatpush1.bf16.msra.mxu0 %v342
    %385 = vmatprep.subr.bf16.mxu0 0
    %386 = vmatpush1.bf16.msra.mxu0 %v343
    %387 = vmatprep.subr.bf16.mxu0 0
    %388 = vmatpush1.bf16.msra.mxu0 %v344
    %389 = vmatprep.subr.bf16.mxu0 0
    %390 = vmatpush1.bf16.msra.mxu0 %v345
    %391 = vmatprep.subr.bf16.mxu0 0
    %392 = vmatpush1.bf16.msra.mxu0 %v346
    %393 = vmatprep.subr.bf16.mxu0 0
    %394 = vmatpush1.bf16.msra.mxu0 %v347
    %395 = vmatprep.subr.bf16.mxu0 0
    %396 = vmatpush1.bf16.msra.mxu0 %v348
    %397 = vmatprep.mubr.bf16.mxu0 %v229
    %398 = vmatmul.mubr.bf16.gmra.mrb[0].mxu0 %v228
    %v399 = vpop.f32.mrb[0].mxu0
    %v400 = vadd.f32 %v267, %v399
    %v401 = vpop.f32.mrb[0].mxu0
    %v402 = vpop.f32.mrb[0].mxu0
    %v403 = vadd.f32 %v267, %v402
    %v404 = vpop.f32.mrb[0].mxu0
    %405 = vdwg.mxu0
    %v406 = vmul.f32 %v400, 0.2
    %v407 = vmul.f32 %v403, 0.2
    %v408 = vmax.f32 %v400, %v406
    %v409 = vmax.f32 %v403, %v407
    %v410 = vpack.c.bf16 %v409, %v408
    %v411 = vld [vmem:[%s5] sm:$0xf]
    %v412 = vld [vmem:[%s5 + $0x4] sm:$0xf]
    %v413 = vld [vmem:[%s5 + $0x8] sm:$0xf]
    %v414 = vld [vmem:[%s5 + $0xc] sm:$0xf]
    %v415 = vld [vmem:[%s5 + $0x10] sm:$0xf]
    %v416 = vld [vmem:[%s5 + $0x14] sm:$0xf]
    %v417 = vld [vmem:[%s5 + $0x18] sm:$0xf]
    %v418 = vld [vmem:[%s5 + $0x1c] sm:$0xf]
    %v419 = vld [vmem:[%s5 + $0x20] sm:$0xf]
    %v420 = vld [vmem:[%s5 + $0x24] sm:$0xf]
    %v421 = vld [vmem:[%s5 + $0x28] sm:$0xf]
    %v422 = vld [vmem:[%s5 + $0x2c] sm:$0xf]
    %v423 = vld [vmem:[%s5 + $0x30] sm:$0xf]
    %v424 = vld [vmem:[%s5 + $0x34] sm:$0xf]
    %v425 = vld [vmem:[%s5 + $0x38] sm:$0xf]
    %v426 = vld [vmem:[%s5 + $0x3c] sm:$0xf]
    %v427 = vld [vmem:[%s6] sm:$0x1]
    %v429 = vlaneseq
    %v430 = vshrl.u32 %v429, 7
    %v431 = vsub.s32 0, %v430
    %v432 = vrot.slane %v427, %v431
    %v450 = vunpack.c.l.b16 %v411
    %v451 = vunpack.c.l.b16 %v412
    %v452 = vunpack.c.l.b16 %v413
    %v453 = vunpack.c.l.b16 %v414
    %v454 = vunpack.c.l.b16 %v415
    %v455 = vunpack.c.l.b16 %v416
    %v456 = vunpack.c.l.b16 %v417
    %v457 = vunpack.c.l.b16 %v418
    %v458 = vunpack.c.l.b16 %v419
    %v459 = vunpack.c.l.b16 %v420
    %v460 = vunpack.c.l.b16 %v421
    %v461 = vunpack.c.l.b16 %v422
    %v462 = vunpack.c.l.b16 %v423
    %v463 = vunpack.c.l.b16 %v424
    %v464 = vunpack.c.l.b16 %v425
    %v465 = vunpack.c.l.b16 %v426
    %v466 = vpack.c.b16 %v451, %v450
    %v467 = vpack.c.b16 %v453, %v452
    %v468 = vpack.c.b16 %v455, %v454
    %v469 = vpack.c.b16 %v457, %v456
    %v470 = vpack.c.b16 %v459, %v458
    %v471 = vpack.c.b16 %v461, %v460
    %v472 = vpack.c.b16 %v463, %v462
    %v473 = vpack.c.b16 %v465, %v464
    %482 = vmatprep.subr.bf16.mxu0 0
    %483 = vmatpush1.bf16.msra.mxu0 %v466
    %484 = vmatprep.subr.bf16.mxu0 0
    %485 = vmatpush1.bf16.msra.mxu0 %v467
    %486 = vmatprep.subr.bf16.mxu0 0
    %487 = vmatpush1.bf16.msra.mxu0 %v468
    %488 = vmatprep.subr.bf16.mxu0 0
    %489 = vmatpush1.bf16.msra.mxu0 %v469
    %490 = vmatprep.subr.bf16.mxu0 0
    %491 = vmatpush1.bf16.msra.mxu0 %v470
    %492 = vmatprep.subr.bf16.mxu0 0
    %493 = vmatpush1.bf16.msra.mxu0 %v471
    %494 = vmatprep.subr.bf16.mxu0 0
    %495 = vmatpush1.bf16.msra.mxu0 %v472
    %496 = vmatprep.subr.bf16.mxu0 0
    %497 = vmatpush1.bf16.msra.mxu0 %v473
    %498 = vmatprep.subr.bf16.mxu0 0
    %499 = vmatpush1.bf16.msra.mxu0 0
    %500 = vmatprep.subr.bf16.mxu0 0
    %501 = vmatpush1.bf16.msra.mxu0 0
    %502 = vmatprep.subr.bf16.mxu0 0
    %503 = vmatpush1.bf16.msra.mxu0 0
    %504 = vmatprep.subr.bf16.mxu0 0
    %505 = vmatpush1.bf16.msra.mxu0 0
    %506 = vmatprep.subr.bf16.mxu0 0
    %507 = vmatpush1.bf16.msra.mxu0 0
    %508 = vmatprep.subr.bf16.mxu0 0
    %509 = vmatpush1.bf16.msra.mxu0 0
    %510 = vmatprep.subr.bf16.mxu0 0
    %511 = vmatpush1.bf16.msra.mxu0 0
    %512 = vmatprep.subr.bf16.mxu0 0
    %513 = vmatpush1.bf16.msra.mxu0 0
    %514 = vmatprep.mubr.bf16.mxu0 0
    %515 = vmatmul.mubr.bf16.gmra.mrb[0].mxu0 %v410
    %v516 = vpop.f32.mrb[0].mxu0
    %v517 = vadd.f32 %v432, %v516
    %v518 = vpop.f32.mrb[0].mxu0
    %v519 = vpop.f32.mrb[0].mxu0
    %v520 = vadd.f32 %v432, %v519
    %v521 = vpop.f32.mrb[0].mxu0
    %522 = vdwg.mxu0
    %v523 = vmul.f32 %v517, 0.2
    %v524 = vmul.f32 %v520, 0.2
    %v525 = vmax.f32 %v517, %v523
    %v526 = vmax.f32 %v520, %v524
    %v527 = vpack.c.bf16 %v526, %v525
    %v528 = vld [vmem:[%s7] sm:$0xf]
    %v529 = vld [vmem:[%s7 + $0x4] sm:$0xf]
    %v530 = vld [vmem:[%s7 + $0x8] sm:$0xf]
    %v531 = vld [vmem:[%s7 + $0xc] sm:$0xf]
    %v532 = vld [vmem:[%s7 + $0x10] sm:$0xf]
    %v533 = vld [vmem:[%s7 + $0x14] sm:$0xf]
    %v534 = vld [vmem:[%s7 + $0x18] sm:$0xf]
    %v535 = vld [vmem:[%s7 + $0x1c] sm:$0xf]
    %v536 = vld [vmem:[%s8] sm:$0x1]
    %v538 = vlaneseq
    %v539 = vshrl.u32 %v538, 7
    %v540 = vsub.s32 0, %v539
    %v541 = vrot.slane %v536, %v540
    %v551 = vunpack.c.l.b16 %v528
    %v552 = vunpack.c.l.b16 %v529
    %v553 = vunpack.c.l.b16 %v530
    %v554 = vunpack.c.l.b16 %v531
    %v555 = vunpack.c.l.b16 %v532
    %v556 = vunpack.c.l.b16 %v533
    %v557 = vunpack.c.l.b16 %v534
    %v558 = vunpack.c.l.b16 %v535
    %v559 = vpack.c.b16 %v552, %v551
    %v560 = vpack.c.b16 %v554, %v553
    %v561 = vpack.c.b16 %v556, %v555
    %v562 = vpack.c.b16 %v558, %v557
    %vm567 = vcmask 523264
    %v569 = vsel %vm567, %v527, 0
    %571 = vmatprep.subr.bf16.mxu0 0
    %572 = vmatpush1.bf16.msra.mxu0 %v559
    %573 = vmatprep.subr.bf16.mxu0 0
    %574 = vmatpush1.bf16.msra.mxu0 %v560
    %575 = vmatprep.subr.bf16.mxu0 0
    %576 = vmatpush1.bf16.msra.mxu0 %v561
    %577 = vmatprep.subr.bf16.mxu0 0
    %578 = vmatpush1.bf16.msra.mxu0 %v562
    %579 = vmatprep.subr.bf16.mxu0 0
    %580 = vmatpush1.bf16.msra.mxu0 0
    %581 = vmatprep.subr.bf16.mxu0 0
    %582 = vmatpush1.bf16.msra.mxu0 0
    %583 = vmatprep.subr.bf16.mxu0 0
    %584 = vmatpush1.bf16.msra.mxu0 0
    %585 = vmatprep.subr.bf16.mxu0 0
    %586 = vmatpush1.bf16.msra.mxu0 0
    %587 = vmatprep.subr.bf16.mxu0 0
    %588 = vmatpush1.bf16.msra.mxu0 0
    %589 = vmatprep.subr.bf16.mxu0 0
    %590 = vmatpush1.bf16.msra.mxu0 0
    %591 = vmatprep.subr.bf16.mxu0 0
    %592 = vmatpush1.bf16.msra.mxu0 0
    %593 = vmatprep.subr.bf16.mxu0 0
    %594 = vmatpush1.bf16.msra.mxu0 0
    %595 = vmatprep.subr.bf16.mxu0 0
    %596 = vmatpush1.bf16.msra.mxu0 0
    %597 = vmatprep.subr.bf16.mxu0 0
    %598 = vmatpush1.bf16.msra.mxu0 0
    %599 = vmatprep.subr.bf16.mxu0 0
    %600 = vmatpush1.bf16.msra.mxu0 0
    %601 = vmatprep.subr.bf16.mxu0 0
    %602 = vmatpush1.bf16.msra.mxu0 0
    %603 = vmatprep.mubr.bf16.mxu0 0
    %604 = vmatmul.mubr.bf16.gmra.mrb[0].mxu0 %v569
    %v605 = vpop.f32.mrb[0].mxu0
    %v606 = vadd.f32 %v541, %v605
    %v607 = vpop.f32.mrb[0].mxu0
    %v608 = vpop.f32.mrb[0].mxu0
    %v609 = vadd.f32 %v541, %v608
    %v610 = vpop.f32.mrb[0].mxu0
    %611 = vdwg.mxu0
    %vm612 = vcmask 15360
    %613 = vst.msk [vmem:[%s9] sm:$0xff] %vm612, %v606
    %614 = vst.msk [vmem:[%s9 + $0x8] sm:$0xff] %vm612, %v609
    // Predicated region
    $region46: #{tpu_custom_call.1} parent=1 // pred_check
      _
    $region47: #{tpu_custom_call.1} parent=1 // pred_check_branch
      %616 = sbr.rel (0) target = $region49
    $region48: #{tpu_custom_call.1} parent=1 // pred_region
      _
    $region49: #{tpu_custom_call.1} parent=1 // pred_fallthru
      _
    // Predicated region
    $region50: #{tpu_custom_call.1} parent=1 // pred_check
      _
    $region51: #{tpu_custom_call.1} parent=1 // pred_check_branch
      %618 = sbr.rel (0) target = $region53
    $region52: #{tpu_custom_call.1} parent=1 // pred_region
      _
    $region53: #{tpu_custom_call.1} parent=1 // pred_fallthru
      _
    %619 = vsyncpa [#allocation3], 1
    %620 = vsyncpa [#allocation5], 1

</llo_original>
